<compile_context>
chip_gen: v6e
topology: v6e:2x2x1
jax: 0.10.0
libtpu: 0.0.40
codegen_flags: <defaults>
</compile_context>

<pallas_src>
import functools

import jax
import jax.numpy as jnp
from jax import lax
from jax.experimental import pallas as pl
from jax.experimental.pallas import tpu as pltpu

_MIB = 1024 * 1024


def _detect_vmem_cap():
    # Generation-aware VMEM ceiling: leave headroom for Mosaic internal scratch.
    try:
        cap = int(getattr(pltpu.get_tpu_info(), "vmem_capacity_bytes", 128 * _MIB))
    except Exception:  # pragma: no cover - conservative fallback
        cap = 128 * _MIB
    if cap <= 64 * _MIB:          # v7x: 64 MiB per TensorCore
        return 48 * _MIB
    return 64 * _MIB              # v5e / v6e: 128 MiB physical


_VMEM_CAP = _detect_vmem_cap()
_TILE_BUDGET = min(_VMEM_CAP - 16 * _MIB, 24 * _MIB)   # budget for tile_m-scaled buffers
_W_RESIDENT_BUDGET = 8 * _MIB                          # 2x pipeline copies of bf16 weight


# ---------------------------------------------------------------------------
# Pallas kernels
# ---------------------------------------------------------------------------
def _gemm_bias_relu_single_k_kernel(p_ref, w_ref, b_ref, o_ref):
    # Whole K fits in one block: no accumulator, write the epilogue directly.
    acc = jnp.dot(p_ref[...], w_ref[...], preferred_element_type=jnp.float32)
    o_ref[...] = jnp.maximum(acc + b_ref[...], 0.0).astype(o_ref.dtype)


def _gemm_bias_relu_multi_k_kernel(p_ref, w_ref, b_ref, o_ref, acc_ref, *, sliced_tk):
    # p_ref:   (TM, TK)            bf16 im2col patch tile
    # w_ref:   (TK, Cout_pad)      bf16 weight tile   (sliced_tk is None)
    #          (K_pad, Cout_pad)   full resident weight (sliced_tk = TK)
    # b_ref:   (1, Cout_pad)       f32 folded BN bias
    # o_ref:   (TM, Cout_pad)      bf16 output tile (lane-dense, multiple of 128)
    # acc_ref: (TM, Cout_pad)      f32 VMEM accumulator (resident across K steps)
    k = pl.program_id(1)
    if sliced_tk is None:
        w = w_ref[...]
    else:
        start = pl.multiple_of(k * sliced_tk, 128)
        w = w_ref[pl.ds(start, sliced_tk), :]
    part = jnp.dot(p_ref[...], w, preferred_element_type=jnp.float32)

    @pl.when(k == 0)
    def _init():
        acc_ref[...] = part          # first step: plain store, no zero-init RMW

    @pl.when(k > 0)
    def _accumulate():
        acc_ref[...] += part

    @pl.when(k == pl.num_programs(1) - 1)
    def _finalize():
        # Bias broadcast + ReLU once per output tile; cast to bf16 for writeback.
        o_ref[...] = jnp.maximum(acc_ref[...] + b_ref[...], 0.0).astype(o_ref.dtype)


# ---------------------------------------------------------------------------
# Tile selection
# ---------------------------------------------------------------------------
def _round_up(x, m):
    return (x + m - 1) // m * m


def _choose_tiles(M, K, Cout):
    # Lane-dense output: pad Cout up to a multiple of 128 (unmasked stores, full
    # MXU N-dim).  Zero-padded columns are sliced off by the wrapper.
    cout_pad = _round_up(Cout, 128)

    # --- K tile: adaptive to cout_pad.  Narrow outputs afford a bigger tk, which
    # cuts the number of f32 accumulator read-modify-writes (scarce vst slot on
    # v5e) and the grid-step count.  Prefer an exact divisor of K that is a
    # multiple of 128 so the patch matrix is never re-copied by jnp.pad.
    if cout_pad <= 256:
        tk_target = 2048
    elif cout_pad <= 512:
        tk_target = 1536
    elif cout_pad <= 1024:
        tk_target = 1024
    else:
        tk_target = 512
    if K <= tk_target:
        tk, k_pad = K, K                       # single full-extent K block
    else:
        divs = [d for d in range(128, tk_target + 1, 128) if K % d == 0]
        if divs:
            tk, k_pad = max(divs), K           # exact divisor: no K padding
        else:
            tk = tk_target
            k_pad = _round_up(K, tk)           # fallback: minimal zero-pad

    # --- M tile: as large as the VMEM budget allows (fewer grid steps, fewer
    # weight re-streams), preferring divisors of M (no pad re-copy) and an EVEN
    # tile count so both v7x TensorCores get equal work on the parallel axis.
    tm_target = 1024 if cout_pad <= 512 else (512 if cout_pad <= 1024 else 256)
    per_row = 4 * tk + 4 * cout_pad + 4 * cout_pad   # 2x bf16 patch + 2x bf16 out + f32 acc
    tm_target = max(128, min(tm_target, (_TILE_BUDGET // per_row) // 16 * 16))

    cands = [t for t in range(16, min(tm_target, M) + 1, 16) if M % t == 0]
    even = [t for t in cands if (M // t) % 2 == 0 and t >= 256]
    if even:
        tile_m, m_pad = max(even), M           # even #tiles, no pad
    elif M <= tm_target:
        tile_m, m_pad = M, M                   # single full-extent tile, no pad
    elif cands:
        tile_m, m_pad = max(cands), M          # exact divisor (odd #tiles)
    else:
        tile_m = tm_target                     # fallback: minimal zero-pad of M
        m_pad = _round_up(M, tile_m)
    return tile_m, m_pad, tk, k_pad, cout_pad


# ---------------------------------------------------------------------------
# Fused GEMM + bias + ReLU (the whole BasicConv2d after im2col / BN folding)
# ---------------------------------------------------------------------------
def _fused_gemm_bias_relu(patches, w2d, bias2d):
    # patches: (M, K) bf16 ; w2d: (K, Cout) bf16 (BN scale folded) ; bias2d: (1, Cout) f32
    M, K = patches.shape
    Cout = w2d.shape[1]
    tile_m, m_pad, tk, k_pad, cout_pad = _choose_tiles(M, K, Cout)
    n_m = m_pad // tile_m
    n_k = k_pad // tk

    if m_pad != M or k_pad != K:
        patches = jnp.pad(patches, ((0, m_pad - M), (0, k_pad - K)))
    if k_pad != K or cout_pad != Cout:
        w2d = jnp.pad(w2d, ((0, k_pad - K), (0, cout_pad - Cout)))
    if cout_pad != Cout:
        bias2d = jnp.pad(bias2d, ((0, 0), (0, cout_pad - Cout)))

    if n_k == 1:
        # Small/medium K: one K block, no accumulator; the constant weight block
        # index means the weight is DMA'd from HBM exactly once.
        kernel = _gemm_bias_relu_single_k_kernel
        grid = (n_m,)
        in_specs = [
            pl.BlockSpec((tile_m, k_pad), lambda i: (i, 0)),
            pl.BlockSpec((k_pad, cout_pad), lambda i: (0, 0)),
            pl.BlockSpec((1, cout_pad), lambda i: (0, 0)),
        ]
        out_spec = pl.BlockSpec((tile_m, cout_pad), lambda i: (i, 0))
        scratch = []
        semantics = ("parallel",)
        w_block_k = k_pad
        has_acc = False
    else:
        # K-tiled path with a resident f32 accumulator (init/finalize via pl.when).
        # If the folded weight fits in VMEM, keep it fully resident (fetched once)
        # and slice inside the kernel; otherwise stream (tk, cout_pad) tiles.
        weight_resident = 2 * k_pad * cout_pad * 2 <= _W_RESIDENT_BUDGET
        kernel = functools.partial(_gemm_bias_relu_multi_k_kernel,
                                   sliced_tk=tk if weight_resident else None)
        grid = (n_m, n_k)
        if weight_resident:
            w_spec = pl.BlockSpec((k_pad, cout_pad), lambda i, k: (0, 0))
            w_block_k = k_pad
        else:
            w_spec = pl.BlockSpec((tk, cout_pad), lambda i, k: (k, 0))
            w_block_k = tk
        in_specs = [
            pl.BlockSpec((tile_m, tk), lambda i, k: (i, k)),
            w_spec,
            pl.BlockSpec((1, cout_pad), lambda i, k: (0, 0)),
        ]
        out_spec = pl.BlockSpec((tile_m, cout_pad), lambda i, k: (i, 0))
        scratch = [pltpu.VMEM((tile_m, cout_pad), jnp.float32)]
        semantics = ("parallel", "arbitrary")
        has_acc = True

    # Explicit VMEM budget, capped per generation (48 MiB on v7x's 64 MiB VMEM).
    est = (2 * tile_m * tk * 2                      # bf16 patch tiles, double-buffered
           + 2 * w_block_k * cout_pad * 2           # bf16 weight buffers
           + 2 * tile_m * cout_pad * 2              # bf16 output tiles, double-buffered
           + (tile_m * cout_pad * 4 if has_acc else 0)   # f32 accumulator
           + 2 * cout_pad * 4)                      # folded BN bias
    vmem_limit = int(min(max(2 * est, 32 * _MIB), _VMEM_CAP))

    out = pl.pallas_call(
        kernel,
        out_shape=jax.ShapeDtypeStruct((m_pad, cout_pad), jnp.bfloat16),
        grid_spec=pltpu.PrefetchScalarGridSpec(
            num_scalar_prefetch=0,
            grid=grid,
            in_specs=in_specs,
            out_specs=out_spec,
            scratch_shapes=scratch,
        ),
        compiler_params=pltpu.CompilerParams(
            dimension_semantics=semantics,
            vmem_limit_bytes=vmem_limit,
        ),
    )(patches, w2d, bias2d)

    if m_pad != M or cout_pad != Cout:
        out = out[:M, :Cout]
    return out


# ---------------------------------------------------------------------------
# Glue: NHWC im2col (emitted in bf16, GEMM K-order) + BN folding
# ---------------------------------------------------------------------------
def _im2col_nhwc(x, kh, kw, stride, padding):
    # x: (N, H, W, C) -> (N*Ho*Wo, kh*kw*C); K-order = (kh, kw, cin), matching the
    # flattened weight.  Single bf16 materialization, no extra transpose pass.
    N, H, W, C = x.shape
    if padding:
        x = jnp.pad(x, ((0, 0), (padding, padding), (padding, padding), (0, 0)))
    Ho = (H + 2 * padding - kh) // stride + 1
    Wo = (W + 2 * padding - kw) // stride + 1
    cols = []
    for i in range(kh):
        for j in range(kw):
            cols.append(x[:, i:i + Ho * stride:stride, j:j + Wo * stride:stride, :])
    p = jnp.stack(cols, axis=3).reshape(N * Ho * Wo, kh * kw * C)
    return p, Ho, Wo


def _fold_bn(weight, gamma, beta, mean, var, eps):
    # Fold BN into the conv: scale into the weight (f32 -> bf16); bias stays f32.
    scale = gamma.astype(jnp.float32) / jnp.sqrt(var.astype(jnp.float32) + eps)
    bias = beta.astype(jnp.float32) - mean.astype(jnp.float32) * scale
    Cout, Cin, KH, KW = weight.shape
    w2d = (weight.astype(jnp.float32) * scale[:, None, None, None]
           ).transpose(2, 3, 1, 0).reshape(KH * KW * Cin, Cout).astype(jnp.bfloat16)
    return w2d, bias.reshape(1, Cout)


@functools.partial(jax.jit, static_argnames=("stride", "padding", "eps"))
def basic_conv2d_nhwc(x_nhwc, weight, gamma, beta, running_mean, running_var,
                      *, stride=1, padding=0, eps=1e-3):
    """BasicConv2d forward in NHWC (internal layout; bf16 output).

    `weight` is the PyTorch OIHW tensor; BN uses running statistics.
    """
    N = x_nhwc.shape[0]
    Cout, _, KH, KW = weight.shape
    w2d, bias2d = _fold_bn(weight, gamma, beta, running_mean, running_var, eps)
    patches, Ho, Wo = _im2col_nhwc(x_nhwc.astype(jnp.bfloat16), KH, KW, stride, padding)
    out = _fused_gemm_bias_relu(patches, w2d, bias2d)                 # (M, Cout) bf16
    return out.reshape(N, Ho, Wo, Cout)


@functools.partial(jax.jit, static_argnames=("stride", "padding", "eps"))
def basic_conv2d_group_nhwc(x_nhwc, weights, gammas, betas, means, variances,
                            *, stride=1, padding=0, eps=1e-3):
    """Several BasicConv2d branches sharing the same input and kernel size
    (e.g. InceptionB branch1x1 / branch_pool, Bottleneck conv1 + downsample) run
    as ONE GEMM with their BN-folded weights concatenated along Cout: the shared
    im2col matrix is read once and the 128-lane dim is dense with real channels."""
    KH, KW = weights[0].shape[2], weights[0].shape[3]
    folded = [_fold_bn(w, g, b, m, v, eps)
              for w, g, b, m, v in zip(weights, gammas, betas, means, variances)]
    w2d = jnp.concatenate([f[0] for f in folded], axis=1)
    bias2d = jnp.concatenate([f[1] for f in folded], axis=1)
    N = x_nhwc.shape[0]
    patches, Ho, Wo = _im2col_nhwc(x_nhwc.astype(jnp.bfloat16), KH, KW, stride, padding)
    out = _fused_gemm_bias_relu(patches, w2d, bias2d).reshape(N, Ho, Wo, -1)
    splits, off = [], 0
    for w in weights:
        c = w.shape[0]
        splits.append(out[..., off:off + c])
        off += c
    return tuple(splits)


@functools.partial(jax.jit, static_argnames=("stride", "padding", "eps"))
def basic_conv2d(x_nchw, weight, gamma, beta, running_mean, running_var,
                 *, stride=1, padding=0, eps=1e-3):
    """PyTorch-semantics entry point (NCHW in / NCHW out, bf16 output).

    For stacked layers, use `basic_conv2d_nhwc` end-to-end and convert only at
    the network boundary — the NCHW<->NHWC transposes here are pure HBM traffic.
    """
    x_nhwc = jnp.transpose(x_nchw, (0, 2, 3, 1))
    y = basic_conv2d_nhwc(x_nhwc, weight, gamma, beta, running_mean, running_var,
                          stride=stride, padding=padding, eps=eps)
    return jnp.transpose(y, (0, 3, 1, 2))


# ---------------------------------------------------------------------------
# References (pure JAX) for validation
# ---------------------------------------------------------------------------
def _reference_f32(x, weight, gamma, beta, mean, var, *, stride, padding, eps=1e-3):
    # Exact module semantics in f32: conv -> BN(inference) -> ReLU.
    y = lax.conv_general_dilated(
        x, weight, window_strides=(stride, stride),
        padding=[(padding, padding), (padding, padding)],
        dimension_numbers=("NCHW", "OIHW", "NCHW"))
    scale = (gamma / jnp.sqrt(var + eps)).reshape(1, -1, 1, 1)
    bias = (beta - mean * gamma / jnp.sqrt(var + eps)).reshape(1, -1, 1, 1)
    return jnp.maximum(y * scale + bias, 0.0)


def _reference_bf16(x, weight, gamma, beta, mean, var, *, stride, padding, eps=1e-3):
    # Same numerics as the kernel path: BN scale folded into a bf16 weight, bf16
    # activations, f32 accumulation, f32 bias/ReLU epilogue, bf16 output.
    scale = gamma / jnp.sqrt(var + eps)
    w = (weight * scale[:, None, None, None]).astype(jnp.bfloat16)
    y = lax.conv_general_dilated(
        x.astype(jnp.bfloat16), w, window_strides=(stride, stride),
        padding=[(padding, padding), (padding, padding)],
        dimension_numbers=("NCHW", "OIHW", "NCHW"),
        preferred_element_type=jnp.float32)
    bias = (beta - mean * scale).reshape(1, -1, 1, 1)
    return jnp.maximum(y + bias, 0.0).astype(jnp.bfloat16)


if __name__ == "__main__":
    key = jax.random.PRNGKey(0)
    ks = jax.random.split(key, 16)

    # --- BasicConv2d(4, 8, kernel_size=3, padding=1): the 3x3 pattern
    #     (Bottleneck conv2 / InceptionB branch3x3dbl) at small shapes. ---
    N, Cin, H, W = 2, 4, 16, 16
    Cout, KH, KW = 8, 3, 3

    x = jax.random.normal(ks[0], (N, Cin, H, W), dtype=jnp.float32)
    weight = jax.random.normal(ks[1], (Cout, Cin, KH, KW), dtype=jnp.float32) * 0.1
    gamma = 1.0 + 0.1 * jax.random.normal(ks[2], (Cout,), dtype=jnp.float32)
    beta = 0.1 * jax.random.normal(ks[3], (Cout,), dtype=jnp.float32)
    running_mean = 0.1 * jax.random.normal(ks[4], (Cout,), dtype=jnp.float32)
    running_var = 1.0 + 0.1 * jax.random.uniform(ks[5], (Cout,), dtype=jnp.float32)

    out = basic_conv2d(x, weight, gamma, beta, running_mean, running_var,
                       stride=1, padding=1)
    out = jax.block_until_ready(out)
    assert out.shape == (N, Cout, H, W), out.shape
    assert out.dtype == jnp.bfloat16, out.dtype

    ref_bf16 = _reference_bf16(x, weight, gamma, beta, running_mean, running_var,
                               stride=1, padding=1)
    ref_f32 = _reference_f32(x, weight, gamma, beta, running_mean, running_var,
                             stride=1, padding=1)
    o32 = out.astype(jnp.float32)
    # Faithful to the bf16-operand / f32-accumulate / bf16-output numerics...
    assert jnp.allclose(o32, ref_bf16.astype(jnp.float32), atol=2e-2, rtol=2e-2), \
        float(jnp.max(jnp.abs(o32 - ref_bf16.astype(jnp.float32))))
    # ...and close to the exact f32 module semantics (bf16 rounding only).
    assert jnp.allclose(o32, ref_f32, atol=5e-2, rtol=5e-2), \
        float(jnp.max(jnp.abs(o32 - ref_f32)))

    # --- BasicConv2d(4, 16, kernel_size=1): the 1x1 pattern
    #     (Bottleneck conv1/conv3, InceptionB branch1x1 / branch_pool). ---
    Cout1 = 16
    w1 = jax.random.normal(ks[6], (Cout1, Cin, 1, 1), dtype=jnp.float32) * 0.2
    gamma1 = 1.0 + 0.1 * jax.random.normal(ks[7], (Cout1,), dtype=jnp.float32)
    beta1 = 0.1 * jax.random.normal(ks[8], (Cout1,), dtype=jnp.float32)
    mean1 = 0.1 * jax.random.normal(ks[9], (Cout1,), dtype=jnp.float32)
    var1 = 1.0 + 0.1 * jax.random.uniform(ks[10], (Cout1,), dtype=jnp.float32)

    out1 = jax.block_until_ready(
        basic_conv2d(x, w1, gamma1, beta1, mean1, var1, stride=1, padding=0))
    ref1 = _reference_bf16(x, w1, gamma1, beta1, mean1, var1, stride=1, padding=0)
    assert out1.shape == (N, Cout1, H, W), out1.shape
    assert jnp.allclose(out1.astype(jnp.float32), ref1.astype(jnp.float32),
                        atol=2e-2, rtol=2e-2), \
        float(jnp.max(jnp.abs(out1.astype(jnp.float32) - ref1.astype(jnp.float32))))

    # --- Grouped same-input 1x1 branches (InceptionB branch1x1 + branch_pool
    #     style): one lane-dense GEMM over concatenated folded weights. ---
    Cout1b = 8
    w1b = jax.random.normal(ks[11], (Cout1b, Cin, 1, 1), dtype=jnp.float32) * 0.2
    gamma1b = 1.0 + 0.1 * jax.random.normal(ks[12], (Cout1b,), dtype=jnp.float32)
    beta1b = 0.1 * jax.random.normal(ks[13], (Cout1b,), dtype=jnp.float32)
    mean1b = 0.1 * jax.random.normal(ks[14], (Cout1b,), dtype=jnp.float32)
    var1b = 1.0 + 0.1 * jax.random.uniform(ks[15], (Cout1b,), dtype=jnp.float32)

    x_nhwc = jnp.transpose(x, (0, 2, 3, 1))
    ga, gb = basic_conv2d_group_nhwc(
        x_nhwc, [w1, w1b], [gamma1, gamma1b], [beta1, beta1b],
        [mean1, mean1b], [var1, var1b], stride=1, padding=0)
    ga = jax.block_until_ready(ga)
    gb = jax.block_until_ready(gb)
    ref_a = jnp.transpose(ref1, (0, 2, 3, 1))
    ref_b = jnp.transpose(
        _reference_bf16(x, w1b, gamma1b, beta1b, mean1b, var1b, stride=1, padding=0),
        (0, 2, 3, 1))
    assert ga.shape == (N, H, W, Cout1) and gb.shape == (N, H, W, Cout1b)
    assert jnp.allclose(ga.astype(jnp.float32), ref_a.astype(jnp.float32),
                        atol=2e-2, rtol=2e-2)
    assert jnp.allclose(gb.astype(jnp.float32), ref_b.astype(jnp.float32),
                        atol=2e-2, rtol=2e-2)

    # --- Directly exercise the K-tiled accumulator path (weight resident in
    #     VMEM, sliced with pl.ds inside the kernel) with a synthetic GEMM. ---
    Mg, Kg, Cg = 256, 4096, 200
    pk = jax.random.split(jax.random.PRNGKey(1), 3)
    pg = (jax.random.normal(pk[0], (Mg, Kg), jnp.float32) * 0.05).astype(jnp.bfloat16)
    wg = (jax.random.normal(pk[1], (Kg, Cg), jnp.float32) * 0.05).astype(jnp.bfloat16)
    bg = jax.random.normal(pk[2], (1, Cg), jnp.float32) * 0.1
    og = jax.block_until_ready(jax.jit(_fused_gemm_bias_relu)(pg, wg, bg))
    ref_g = jnp.maximum(
        jnp.dot(pg, wg, preferred_element_type=jnp.float32) + bg, 0.0
    ).astype(jnp.bfloat16)
    assert og.shape == (Mg, Cg), og.shape
    assert jnp.allclose(og.astype(jnp.float32), ref_g.astype(jnp.float32),
                        atol=2e-2, rtol=2e-2), \
        float(jnp.max(jnp.abs(og.astype(jnp.float32) - ref_g.astype(jnp.float32))))

    print("KERNEL_OK")
</pallas_src>

<mosaic_0001>
module attributes {stable_mosaic.version = 11 : i64} {
  func.func @_gemm_bias_relu_single_k_kernel(%arg0: i32, %arg1: memref<256x36xbf16, #tpu.memory_space<vmem>>, %arg2: memref<36x128xbf16, #tpu.memory_space<vmem>>, %arg3: memref<1x128xf32, #tpu.memory_space<vmem>>, %arg4: memref<256x128xbf16, #tpu.memory_space<vmem>>) attributes {dimension_semantics = [#tpu.dimension_semantics<parallel>], iteration_bounds = array<i64: 2>, scalar_prefetch = 0 : i64, scratch_operands = 0 : i64, tpu.core_type = #tpu.core_type<tc>, window_params = [{transform_indices = @transform_0, window_bounds = array<i64: 256, 36>}, {pipeline_mode = #tpu.pipeline_mode<synchronous>, transform_indices = @transform_1, window_bounds = array<i64: 36, 128>}, {pipeline_mode = #tpu.pipeline_mode<synchronous>, transform_indices = @transform_2, window_bounds = array<i64: 1, 128>}, {transform_indices = @transform_3, window_bounds = array<i64: 256, 128>}]} {
    %c0 = arith.constant 0 : index
    %c0_0 = arith.constant 0 : index
    %0 = vector.load %arg1[%c0, %c0_0] : memref<256x36xbf16, #tpu.memory_space<vmem>>, vector<256x36xbf16>
    %c0_1 = arith.constant 0 : index
    %c0_2 = arith.constant 0 : index
    %1 = vector.load %arg2[%c0_1, %c0_2] : memref<36x128xbf16, #tpu.memory_space<vmem>>, vector<36x128xbf16>
    %cst = arith.constant dense<0.000000e+00> : vector<256x128xf32>
    %2 = tpu.matmul %0, %1, %cst {dimension_numbers = #tpu.dot_dimension_numbers<[1], [0], [0], [1], [0, 0, 1, 1], [], []>} : vector<256x36xbf16>, vector<36x128xbf16>, vector<256x128xf32> -> vector<256x128xf32>
    %c0_3 = arith.constant 0 : index
    %c0_4 = arith.constant 0 : index
    %3 = vector.load %arg3[%c0_3, %c0_4] : memref<1x128xf32, #tpu.memory_space<vmem>>, vector<1x128xf32>
    %4 = vector.broadcast %3 : vector<1x128xf32> to vector<256x128xf32>
    %5 = arith.addf %2, %4 : vector<256x128xf32>
    %cst_5 = arith.constant 0.000000e+00 : f32
    %6 = vector.broadcast %cst_5 : f32 to vector<256x128xf32>
    %7 = arith.maximumf %5, %6 : vector<256x128xf32>
    %8 = arith.truncf %7 : vector<256x128xf32> to vector<256x128xbf16>
    %c0_6 = arith.constant 0 : index
    %c0_7 = arith.constant 0 : index
    %9 = vector.load %arg4[%c0_6, %c0_7] : memref<256x128xbf16, #tpu.memory_space<vmem>>, vector<256x128xbf16>
    tpu.vector_store %arg4[%c0_6, %c0_7], %8 {strides = array<i32>} : memref<256x128xbf16, #tpu.memory_space<vmem>>, vector<256x128xbf16>,
    return
  }
  func.func @transform_0(%arg0: i32) -> (i32, i32) {
    %c0_i32 = arith.constant 0 : i32
    %c0_i32_0 = arith.constant 0 : i32
    return %arg0, %c0_i32 : i32, i32
  }
  func.func @transform_1(%arg0: i32) -> (i32, i32) {
    %c0_i32 = arith.constant 0 : i32
    %c0_i32_0 = arith.constant 0 : i32
    %c0_i32_1 = arith.constant 0 : i32
    return %c0_i32, %c0_i32_0 : i32, i32
  }
  func.func @transform_2(%arg0: i32) -> (i32, i32) {
    %c0_i32 = arith.constant 0 : i32
    %c0_i32_0 = arith.constant 0 : i32
    %c0_i32_1 = arith.constant 0 : i32
    return %c0_i32, %c0_i32_0 : i32, i32
  }
  func.func @transform_3(%arg0: i32) -> (i32, i32) {
    %c0_i32 = arith.constant 0 : i32
    %c0_i32_0 = arith.constant 0 : i32
    return %arg0, %c0_i32 : i32, i32
  }
}

</mosaic_0001>

<llo_original>
// kernel: basic_conv2d_nhwc.1
$region0: #{basic_conv2d_nhwc.1}
  #allocation0 [shape = 'u32[]', space=smem, size = 0x4, offset = 0x4, fixed_abs, tag = 'smem constant byte address 0x4 - core index']
  #allocation1 [shape = 'u32[144,128]{1,0:T(1,128)}', space=vmem, size = 0x12000, scoped, tag = 'internal scratch']
  %s0 = inlined_call_operand.vmem [shape: bf16[512,36], index: 0, kind: input, shape index: {}]
  %s1 = inlined_call_operand.vmem [shape: bf16[36,128], index: 1, kind: input, shape index: {}]
  %s2 = inlined_call_operand.vmem [shape: f32[1,128], index: 2, kind: input, shape index: {}]
  %s3 = inlined_call_operand.vmem [shape: bf16[512,128], index: 3, kind: output, shape index: {}]
  %s4 = sld [smem:[#allocation0]]
  $region45: #{basic_conv2d_nhwc.1} parent=0
    _
  %s6 = ssub.s32 1, %s4
  %s7 = scalar_select 0, %s6, %s4
  loop: start=0, step=1, limit=4
  $region2: #{basic_conv2d_nhwc.1} parent=0 // loop_pre_header
    _
  $region3: #{basic_conv2d_nhwc.1} parent=0 // loop_header
    %s9 = sphi 0, %s13
    %p10 = scmp.ge.s32.totalorder %s9, 4
    %s19 = sphi 0, %s21
    %s22 = sphi 0, %s19
    %s23 = sphi 0, %s22
    %s39 = sphi 0, %s23
    %s43 = sphi 0, %s43
    %s45 = sphi 0, %s43
    %s46 = sphi 0, %s45
    %s60 = sphi 0, %s46
    %s64 = sphi 0, %s64
    %s66 = sphi 0, %s64
    %s67 = sphi 0, %s66
    %s81 = sphi 0, %s67
    %s87 = sphi 0, %s89
    %s90 = sphi 0, %s87
    %s91 = sphi 0, %s90
    %s107 = sphi 0, %s91
  $region4: #{basic_conv2d_nhwc.1} parent=0 // loop_header_branch
    %12 = sbr.rel (%p10) target = $region8
  $region5: #{basic_conv2d_nhwc.1} parent=0 // loop_body
    %s14 = ssub.s32 %s9, 1
    %s15 = ssub.s32 %s9, 2
    %s16 = sadd.s32 %s9, 1
    %s17 = ssub.s32 %s9, %s16
    %p18 = scmp.eq.s32.totalorder %s17, 0
    %s20 = sadd.s32 %s19, 1
    %s21 = scalar_select %p18, %s19, %s20
    %p24 = pneg %p18
    %p25 = scmp.eq.s32.totalorder %s9, 1
    %p26 = por %p24, %p25
    %p27 = scmp.ne.s32.totalorder %s19, %s22
    %p28 = scmp.eq.s32.totalorder %s9, 0
    %p29 = por %p27, %p28
    %p30 = scmp.ne.s32.totalorder %s19, %s22
    %p31 = scmp.eq.s32.totalorder %s14, 1
    %p32 = por %p30, %p31
    %p33 = scmp.ne.s32.totalorder %s22, %s23
    %p34 = scmp.eq.s32.totalorder %s14, 0
    %p35 = por %p33, %p34
    %p36 = scmp.ne.s32.totalorder %s22, %s23
    %p37 = scmp.eq.s32.totalorder %s15, 1
    %p38 = por %p36, %p37
    %p40 = scmp.ne.s32.totalorder %s23, %s39
    %p41 = scmp.eq.s32.totalorder %s15, 0
    %p42 = por %p40, %p41
    %s44 = sadd.s32 %s43, 1
    %p47 = scmp.eq.s32.totalorder %s9, 1
    %p48 = scmp.ne.s32.totalorder %s43, %s45
    %p49 = scmp.eq.s32.totalorder %s9, 0
    %p50 = por %p48, %p49
    %p51 = scmp.ne.s32.totalorder %s43, %s45
    %p52 = scmp.eq.s32.totalorder %s14, 1
    %p53 = por %p51, %p52
    %p54 = scmp.ne.s32.totalorder %s45, %s46
    %p55 = scmp.eq.s32.totalorder %s14, 0
    %p56 = por %p54, %p55
    %p57 = scmp.ne.s32.totalorder %s45, %s46
    %p58 = scmp.eq.s32.totalorder %s15, 1
    %p59 = por %p57, %p58
    %p61 = scmp.ne.s32.totalorder %s46, %s60
    %p62 = scmp.eq.s32.totalorder %s15, 0
    %p63 = por %p61, %p62
    %s65 = sadd.s32 %s64, 1
    %p68 = scmp.eq.s32.totalorder %s9, 1
    %p69 = scmp.ne.s32.totalorder %s64, %s66
    %p70 = scmp.eq.s32.totalorder %s9, 0
    %p71 = por %p69, %p70
    %p72 = scmp.ne.s32.totalorder %s64, %s66
    %p73 = scmp.eq.s32.totalorder %s14, 1
    %p74 = por %p72, %p73
    %p75 = scmp.ne.s32.totalorder %s66, %s67
    %p76 = scmp.eq.s32.totalorder %s14, 0
    %p77 = por %p75, %p76
    %p78 = scmp.ne.s32.totalorder %s66, %s67
    %p79 = scmp.eq.s32.totalorder %s15, 1
    %p80 = por %p78, %p79
    %p82 = scmp.ne.s32.totalorder %s67, %s81
    %p83 = scmp.eq.s32.totalorder %s15, 0
    %p84 = por %p82, %p83
    %s85 = ssub.s32 %s9, %s16
    %p86 = scmp.eq.s32.totalorder %s85, 0
    %s88 = sadd.s32 %s87, 1
    %s89 = scalar_select %p86, %s87, %s88
    %p92 = pneg %p86
    %p93 = scmp.eq.s32.totalorder %s9, 1
    %p94 = por %p92, %p93
    %p95 = scmp.ne.s32.totalorder %s87, %s90
    %p96 = scmp.eq.s32.totalorder %s9, 0
    %p97 = por %p95, %p96
    %p98 = scmp.ne.s32.totalorder %s87, %s90
    %p99 = scmp.eq.s32.totalorder %s14, 1
    %p100 = por %p98, %p99
    %p101 = scmp.ne.s32.totalorder %s90, %s91
    %p102 = scmp.eq.s32.totalorder %s14, 0
    %p103 = por %p101, %p102
    %p104 = scmp.ne.s32.totalorder %s90, %s91
    %p105 = scmp.eq.s32.totalorder %s15, 1
    %p106 = por %p104, %p105
    %p108 = scmp.ne.s32.totalorder %s91, %s107
    %p109 = scmp.eq.s32.totalorder %s15, 0
    %p110 = por %p108, %p109
    %p111 = scmp.le.s32.totalorder 1, %s9
    %p112 = scmp.lt.s32.totalorder %s9, 3
    %p113 = pnand %p111, %p112
    %p114 = pneg %p113
    // Predicated region
    $region9: #{basic_conv2d_nhwc.1} parent=5 // pred_check
      _
    $region10: #{basic_conv2d_nhwc.1} parent=5 // pred_check_branch
      %116 = sbr.rel (%p113) target = $region12
    $region11: #{basic_conv2d_nhwc.1} parent=5 // pred_region
      %s117 = ssub.s32 %s9, 1
      // Predicated region
      $region13: #{basic_conv2d_nhwc.1} parent=11 // pred_check
        %p118 = pneg %p56
      $region14: #{basic_conv2d_nhwc.1} parent=11 // pred_check_branch
        %120 = sbr.rel (%p118) target = $region16
      $region15: #{basic_conv2d_nhwc.1} parent=11 // pred_region
        _
      $region16: #{basic_conv2d_nhwc.1} parent=11 // pred_fallthru
        _
      // Predicated region
      $region17: #{basic_conv2d_nhwc.1} parent=11 // pred_check
        %p121 = pneg %p77
      $region18: #{basic_conv2d_nhwc.1} parent=11 // pred_check_branch
        %123 = sbr.rel (%p121) target = $region20
      $region19: #{basic_conv2d_nhwc.1} parent=11 // pred_region
        _
      $region20: #{basic_conv2d_nhwc.1} parent=11 // pred_fallthru
        _
    $region12: #{basic_conv2d_nhwc.1} parent=5 // pred_fallthru
      _
    %p124 = scmp.lt.s32.totalorder %s9, 2
    // Predicated region
    $region21: #{basic_conv2d_nhwc.1} parent=5 // pred_check
      %p125 = pneg %p124
    $region22: #{basic_conv2d_nhwc.1} parent=5 // pred_check_branch
      %127 = sbr.rel (%p125) target = $region24
    $region23: #{basic_conv2d_nhwc.1} parent=5 // pred_region
      // Predicated region
      $region25: #{basic_conv2d_nhwc.1} parent=23 // pred_check
        %p128 = pneg %p29
      $region26: #{basic_conv2d_nhwc.1} parent=23 // pred_check_branch
        %130 = sbr.rel (%p128) target = $region28
      $region27: #{basic_conv2d_nhwc.1} parent=23 // pred_region
        %s131 = smul.u32 32, %s9
        %p132 = scmp.lt.s32.totalorder %s131, 63
        %s133 = scalar_select %p132, %s131, 63
        %s134 = smul.addr %s133, 4
        %s135 = scalar_lea.vmem %s0, %s134
        %s136 = smul.u32 32, %s9
      $region28: #{basic_conv2d_nhwc.1} parent=23 // pred_fallthru
        _
    $region24: #{basic_conv2d_nhwc.1} parent=5 // pred_fallthru
      _
    %p137 = scmp.le.s32.totalorder 1, %s9
    %p138 = scmp.lt.s32.totalorder %s9, 3
    %p139 = pnand %p137, %p138
    %p140 = pneg %p139
    // Predicated region
    $region29: #{basic_conv2d_nhwc.1} parent=5 // pred_check
      _
    $region30: #{basic_conv2d_nhwc.1} parent=5 // pred_check_branch
      %142 = sbr.rel (%p139) target = $region32
    $region31: #{basic_conv2d_nhwc.1} parent=5 // pred_region
      %s143 = ssub.s32 %s9, 1
      %s144 = smul.u32 32, %s14
      %p145 = scmp.lt.s32.totalorder %s144, 63
      %s146 = scalar_select %p145, %s144, 63
      %s147 = smul.addr %s146, 4
      %s148 = scalar_lea.vmem %s0, %s147
      %p149 = pneg %p35
      %p150 = pneg %p32
      %p151 = pneg %p56
      %p152 = pneg %p53
      %p153 = pneg %p77
      %p154 = pneg %p74
      %p155 = pneg %p103
      %p156 = pneg %p100
      %s157 = smul.u32 32, %s14
      %p158 = scmp.lt.s32.totalorder %s157, 63
      %s159 = scalar_select %p158, %s157, 63
      %s160 = smul.addr %s159, 4
      %s161 = scalar_lea.vmem %s3, %s160
      %s162 = smul.u32 32, %s14
      %p163 = scmp.lt.s32.totalorder %s162, 63
      %s164 = scalar_select %p163, %s162, 63
      %s165 = smul.addr %s164, 4
      %s166 = scalar_lea.vmem %s0, %s165
      %s167 = smul.u32 32, %s14
      %s168 = smul.u32 32, %s14
      %p169 = scmp.lt.s32.totalorder %s168, 63
      %s170 = scalar_select %p169, %s168, 63
      %s171 = smul.addr %s170, 4
      %s172 = scalar_lea.vmem %s3, %s171
      %s173 = smul.u32 32, %s14
      %v175 = vld [vmem:[%s166] sm:$0xf]
      %v176 = vld [vmem:[%s166 + $0x4] sm:$0xf]
      %v177 = vld [vmem:[%s166 + $0x8] sm:$0xf]
      %v178 = vld [vmem:[%s166 + $0xc] sm:$0xf]
      %v179 = vld [vmem:[%s166 + $0x10] sm:$0xf]
      %v180 = vld [vmem:[%s166 + $0x14] sm:$0xf]
      %v181 = vld [vmem:[%s166 + $0x18] sm:$0xf]
      %v182 = vld [vmem:[%s166 + $0x1c] sm:$0xf]
      %v183 = vld [vmem:[%s166 + $0x20] sm:$0xf]
      %v184 = vld [vmem:[%s166 + $0x24] sm:$0xf]
      %v185 = vld [vmem:[%s166 + $0x28] sm:$0xf]
      %v186 = vld [vmem:[%s166 + $0x2c] sm:$0xf]
      %v187 = vld [vmem:[%s166 + $0x30] sm:$0xf]
      %v188 = vld [vmem:[%s166 + $0x34] sm:$0xf]
      %v189 = vld [vmem:[%s166 + $0x38] sm:$0xf]
      %v190 = vld [vmem:[%s166 + $0x3c] sm:$0xf]
      %v191 = vld [vmem:[%s166 + $0x40] sm:$0xf]
      %v192 = vld [vmem:[%s166 + $0x44] sm:$0xf]
      %v193 = vld [vmem:[%s166 + $0x48] sm:$0xf]
      %v194 = vld [vmem:[%s166 + $0x4c] sm:$0xf]
      %v195 = vld [vmem:[%s166 + $0x50] sm:$0xf]
      %v196 = vld [vmem:[%s166 + $0x54] sm:$0xf]
      %v197 = vld [vmem:[%s166 + $0x58] sm:$0xf]
      %v198 = vld [vmem:[%s166 + $0x5c] sm:$0xf]
      %v199 = vld [vmem:[%s166 + $0x60] sm:$0xf]
      %v200 = vld [vmem:[%s166 + $0x64] sm:$0xf]
      %v201 = vld [vmem:[%s166 + $0x68] sm:$0xf]
      %v202 = vld [vmem:[%s166 + $0x6c] sm:$0xf]
      %v203 = vld [vmem:[%s166 + $0x70] sm:$0xf]
      %v204 = vld [vmem:[%s166 + $0x74] sm:$0xf]
      %v205 = vld [vmem:[%s166 + $0x78] sm:$0xf]
      %v206 = vld [vmem:[%s166 + $0x7c] sm:$0xf]
      %v207 = vld [vmem:[%s1] sm:$0xf]
      %v208 = vld [vmem:[%s1 + $0x4] sm:$0xf]
      %v209 = vld [vmem:[%s1 + $0x8] sm:$0xf]
      %v210 = vld [vmem:[%s1 + $0xc] sm:$0xf]
      %v211 = vld [vmem:[%s1 + $0x10] sm:$0x3]
      %v212 = vld [vmem:[%s2] sm:$0x1]
      %v214 = vlaneseq
      %v215 = vshrl.u32 %v214, 7
      %v216 = vsub.s32 0, %v215
      %v217 = vrot.slane %v212, %v216
      %v251 = vunpack.c.l.b16 %v175
      %v252 = vunpack.c.l.b16 %v176
      %v253 = vunpack.c.l.b16 %v177
      %v254 = vunpack.c.l.b16 %v178
      %v255 = vunpack.c.l.b16 %v179
      %v256 = vunpack.c.l.b16 %v180
      %v257 = vunpack.c.l.b16 %v181
      %v258 = vunpack.c.l.b16 %v182
      %v259 = vunpack.c.l.b16 %v183
      %v260 = vunpack.c.l.b16 %v184
      %v261 = vunpack.c.l.b16 %v185
      %v262 = vunpack.c.l.b16 %v186
      %v263 = vunpack.c.l.b16 %v187
      %v264 = vunpack.c.l.b16 %v188
      %v265 = vunpack.c.l.b16 %v189
      %v266 = vunpack.c.l.b16 %v190
      %v267 = vunpack.c.l.b16 %v191
      %v268 = vunpack.c.l.b16 %v192
      %v269 = vunpack.c.l.b16 %v193
      %v270 = vunpack.c.l.b16 %v194
      %v271 = vunpack.c.l.b16 %v195
      %v272 = vunpack.c.l.b16 %v196
      %v273 = vunpack.c.l.b16 %v197
      %v274 = vunpack.c.l.b16 %v198
      %v275 = vunpack.c.l.b16 %v199
      %v276 = vunpack.c.l.b16 %v200
      %v277 = vunpack.c.l.b16 %v201
      %v278 = vunpack.c.l.b16 %v202
      %v279 = vunpack.c.l.b16 %v203
      %v280 = vunpack.c.l.b16 %v204
      %v281 = vunpack.c.l.b16 %v205
      %v282 = vunpack.c.l.b16 %v206
      %v283 = vpack.c.b16 %v252, %v251
      %v284 = vpack.c.b16 %v254, %v253
      %v285 = vpack.c.b16 %v256, %v255
      %v286 = vpack.c.b16 %v258, %v257
      %v287 = vpack.c.b16 %v260, %v259
      %v288 = vpack.c.b16 %v262, %v261
      %v289 = vpack.c.b16 %v264, %v263
      %v290 = vpack.c.b16 %v266, %v265
      %v291 = vpack.c.b16 %v268, %v267
      %v292 = vpack.c.b16 %v270, %v269
      %v293 = vpack.c.b16 %v272, %v271
      %v294 = vpack.c.b16 %v274, %v273
      %v295 = vpack.c.b16 %v276, %v275
      %v296 = vpack.c.b16 %v278, %v277
      %v297 = vpack.c.b16 %v280, %v279
      %v298 = vpack.c.b16 %v282, %v281
      %v304 = vunpack.c.l.b16 %v207
      %v305 = vunpack.c.l.b16 %v208
      %v306 = vunpack.c.l.b16 %v209
      %v307 = vunpack.c.l.b16 %v210
      %v308 = vunpack.c.l.b16 %v211
      %v309 = vpack.c.b16 %v305, %v304
      %v310 = vpack.c.b16 %v307, %v306
      %v311 = vpack.c.b16 %v308, %v308
      %vm314 = vcmask 293888
      %v316 = vsel %vm314, %v283, 0
      %v319 = vsel %vm314, %v284, 0
      %v322 = vsel %vm314, %v285, 0
      %v325 = vsel %vm314, %v286, 0
      %v328 = vsel %vm314, %v287, 0
      %v331 = vsel %vm314, %v288, 0
      %v334 = vsel %vm314, %v289, 0
      %v337 = vsel %vm314, %v290, 0
      %v340 = vsel %vm314, %v291, 0
      %v343 = vsel %vm314, %v292, 0
      %v346 = vsel %vm314, %v293, 0
      %v349 = vsel %vm314, %v294, 0
      %v352 = vsel %vm314, %v295, 0
      %v355 = vsel %vm314, %v296, 0
      %v358 = vsel %vm314, %v297, 0
      %v361 = vsel %vm314, %v298, 0
      %vm363 = vcmask 1041408
      %v365 = vsel %vm363, %v311, 0
      %367 = vmatprep.subr.bf16.mxu0 0
      %368 = vmatpush1.bf16.msra.mxu0 0
      %369 = vmatprep.subr.bf16.mxu0 0
      %370 = vmatpush1.bf16.msra.mxu0 0
      %371 = vmatprep.subr.bf16.mxu0 0
      %372 = vmatpush1.bf16.msra.mxu0 0
      %373 = vmatprep.subr.bf16.mxu0 0
      %374 = vmatpush1.bf16.msra.mxu0 0
      %375 = vmatprep.subr.bf16.mxu0 0
      %376 = vmatpush1.bf16.msra.mxu0 0
      %377 = vmatprep.subr.bf16.mxu0 0
      %378 = vmatpush1.bf16.msra.mxu0 %v365
      %379 = vmatprep.subr.bf16.mxu0 0
      %380 = vmatpush1.bf16.msra.mxu0 %v310
      %381 = vmatprep.subr.bf16.mxu0 0
      %382 = vmatpush1.bf16.msra.mxu0 %v309
      %383 = vmatprep.subr.bf16.mxu0 0
      %384 = vmatpush2.bf16.msra.mxu0 0
      %385 = vmatprep.subr.bf16.mxu0 0
      %386 = vmatpush2.bf16.msra.mxu0 0
      %387 = vmatprep.subr.bf16.mxu0 0
      %388 = vmatpush2.bf16.msra.mxu0 0
      %389 = vmatprep.subr.bf16.mxu0 0
      %390 = vmatpush2.bf16.msra.mxu0 0
      %391 = vmatprep.subr.bf16.mxu0 0
      %392 = vmatpush2.bf16.msra.mxu0 0
      %393 = vmatprep.subr.bf16.mxu0 0
      %394 = vmatpush2.bf16.msra.mxu0 0
      %395 = vmatprep.subr.bf16.mxu0 0
      %396 = vmatpush2.bf16.msra.mxu0 0
      %397 = vmatprep.subr.bf16.mxu0 0
      %398 = vmatpush2.bf16.msra.mxu0 0
      %399 = vmatprep.mubr.bf16.mxu0 0
      %400 = vmatmul.mubr.bf16.gmra.mxu0 %v316
      %v401 = vpop.f32.mrf.mxu0
      %v402 = vadd.f32 %v217, %v401
      %v403 = vpop.f32.mrf.mxu0
      %v404 = vpop.f32.mrf.mxu0
      %v405 = vadd.f32 %v217, %v404
      %v406 = vpop.f32.mrf.mxu0
      %407 = vmatprep.mubr.bf16.mxu0 0
      %408 = vmatmul.mubr.bf16.gmra.mxu0 %v319
      %v409 = vpop.f32.mrf.mxu0
      %v410 = vadd.f32 %v217, %v409
      %v411 = vpop.f32.mrf.mxu0
      %v412 = vpop.f32.mrf.mxu0
      %v413 = vadd.f32 %v217, %v412
      %v414 = vpop.f32.mrf.mxu0
      %415 = vmatprep.mubr.bf16.mxu0 0
      %416 = vmatmul.mubr.bf16.gmra.mxu0 %v322
      %v417 = vpop.f32.mrf.mxu0
      %v418 = vadd.f32 %v217, %v417
      %v419 = vpop.f32.mrf.mxu0
      %v420 = vpop.f32.mrf.mxu0
      %v421 = vadd.f32 %v217, %v420
      %v422 = vpop.f32.mrf.mxu0
      %423 = vmatprep.mubr.bf16.mxu0 0
      %424 = vmatmul.mubr.bf16.gmra.mxu0 %v325
      %v425 = vpop.f32.mrf.mxu0
      %v426 = vadd.f32 %v217, %v425
      %v427 = vpop.f32.mrf.mxu0
      %v428 = vpop.f32.mrf.mxu0
      %v429 = vadd.f32 %v217, %v428
      %v430 = vpop.f32.mrf.mxu0
      %431 = vmatprep.mubr.bf16.mxu0 0
      %432 = vmatmul.mubr.bf16.gmra.mxu0 %v328
      %v433 = vpop.f32.mrf.mxu0
      %v434 = vadd.f32 %v217, %v433
      %v435 = vpop.f32.mrf.mxu0
      %v436 = vpop.f32.mrf.mxu0
      %v437 = vadd.f32 %v217, %v436
      %v438 = vpop.f32.mrf.mxu0
      %439 = vmatprep.mubr.bf16.mxu0 0
      %440 = vmatmul.mubr.bf16.gmra.mxu0 %v331
      %v441 = vpop.f32.mrf.mxu0
      %v442 = vadd.f32 %v217, %v441
      %v443 = vpop.f32.mrf.mxu0
      %v444 = vpop.f32.mrf.mxu0
      %v445 = vadd.f32 %v217, %v444
      %v446 = vpop.f32.mrf.mxu0
      %447 = vmatprep.mubr.bf16.mxu0 0
      %448 = vmatmul.mubr.bf16.gmra.mxu0 %v334
      %v449 = vpop.f32.mrf.mxu0
      %v450 = vadd.f32 %v217, %v449
      %v451 = vpop.f32.mrf.mxu0
      %v452 = vpop.f32.mrf.mxu0
      %v453 = vadd.f32 %v217, %v452
      %v454 = vpop.f32.mrf.mxu0
      %455 = vmatprep.mubr.bf16.mxu0 0
      %456 = vmatmul.mubr.bf16.gmra.mxu0 %v337
      %v457 = vpop.f32.mrf.mxu0
      %v458 = vadd.f32 %v217, %v457
      %v459 = vpop.f32.mrf.mxu0
      %v460 = vpop.f32.mrf.mxu0
      %v461 = vadd.f32 %v217, %v460
      %v462 = vpop.f32.mrf.mxu0
      %463 = vmatprep.mubr.bf16.mxu0 0
      %464 = vmatmul.mubr.bf16.gmra.mxu0 %v340
      %v465 = vpop.f32.mrf.mxu0
      %v466 = vadd.f32 %v217, %v465
      %v467 = vpop.f32.mrf.mxu0
      %v468 = vpop.f32.mrf.mxu0
      %v469 = vadd.f32 %v217, %v468
      %v470 = vpop.f32.mrf.mxu0
      %471 = vmatprep.mubr.bf16.mxu0 0
      %472 = vmatmul.mubr.bf16.gmra.mxu0 %v343
      %v473 = vpop.f32.mrf.mxu0
      %v474 = vadd.f32 %v217, %v473
      %v475 = vpop.f32.mrf.mxu0
      %v476 = vpop.f32.mrf.mxu0
      %v477 = vadd.f32 %v217, %v476
      %v478 = vpop.f32.mrf.mxu0
      %479 = vmatprep.mubr.bf16.mxu0 0
      %480 = vmatmul.mubr.bf16.gmra.mxu0 %v346
      %v481 = vpop.f32.mrf.mxu0
      %v482 = vadd.f32 %v217, %v481
      %v483 = vpop.f32.mrf.mxu0
      %v484 = vpop.f32.mrf.mxu0
      %v485 = vadd.f32 %v217, %v484
      %v486 = vpop.f32.mrf.mxu0
      %487 = vmatprep.mubr.bf16.mxu0 0
      %488 = vmatmul.mubr.bf16.gmra.mxu0 %v349
      %v489 = vpop.f32.mrf.mxu0
      %v490 = vadd.f32 %v217, %v489
      %v491 = vpop.f32.mrf.mxu0
      %v492 = vpop.f32.mrf.mxu0
      %v493 = vadd.f32 %v217, %v492
      %v494 = vpop.f32.mrf.mxu0
      %495 = vmatprep.mubr.bf16.mxu0 0
      %496 = vmatmul.mubr.bf16.gmra.mxu0 %v352
      %v497 = vpop.f32.mrf.mxu0
      %v498 = vadd.f32 %v217, %v497
      %v499 = vpop.f32.mrf.mxu0
      %v500 = vpop.f32.mrf.mxu0
      %v501 = vadd.f32 %v217, %v500
      %v502 = vpop.f32.mrf.mxu0
      %503 = vmatprep.mubr.bf16.mxu0 0
      %504 = vmatmul.mubr.bf16.gmra.mxu0 %v355
      %v505 = vpop.f32.mrf.mxu0
      %v506 = vadd.f32 %v217, %v505
      %v507 = vpop.f32.mrf.mxu0
      %v508 = vpop.f32.mrf.mxu0
      %v509 = vadd.f32 %v217, %v508
      %v510 = vpop.f32.mrf.mxu0
      %511 = vmatprep.mubr.bf16.mxu0 0
      %512 = vmatmul.mubr.bf16.gmra.mxu0 %v358
      %v513 = vpop.f32.mrf.mxu0
      %v514 = vadd.f32 %v217, %v513
      %v515 = vpop.f32.mrf.mxu0
      %v516 = vpop.f32.mrf.mxu0
      %v517 = vadd.f32 %v217, %v516
      %v518 = vpop.f32.mrf.mxu0
      %519 = vmatprep.mubr.bf16.mxu0 0
      %520 = vmatmul.mubr.bf16.gmra.mxu0 %v361
      %v521 = vpop.f32.mrf.mxu0
      %v522 = vadd.f32 %v217, %v521
      %v523 = vpop.f32.mrf.mxu0
      %v524 = vpop.f32.mrf.mxu0
      %v525 = vadd.f32 %v217, %v524
      %v526 = vpop.f32.mrf.mxu0
      %527 = vdwg.mxu0
      %v528 = vmax.f32 %v402, 0.0
      %v529 = vmax.f32 %v405, 0.0
      %v530 = vmax.f32 %v410, 0.0
      %v531 = vmax.f32 %v413, 0.0
      %v532 = vmax.f32 %v418, 0.0
      %v533 = vmax.f32 %v421, 0.0
      %v534 = vmax.f32 %v426, 0.0
      %v535 = vmax.f32 %v429, 0.0
      %v536 = vmax.f32 %v434, 0.0
      %v537 = vmax.f32 %v437, 0.0
      %v538 = vmax.f32 %v442, 0.0
      %v539 = vmax.f32 %v445, 0.0
      %v540 = vmax.f32 %v450, 0.0
      %v541 = vmax.f32 %v453, 0.0
      %v542 = vmax.f32 %v458, 0.0
      %v543 = vmax.f32 %v461, 0.0
      %v544 = vmax.f32 %v466, 0.0
      %v545 = vmax.f32 %v469, 0.0
      %v546 = vmax.f32 %v474, 0.0
      %v547 = vmax.f32 %v477, 0.0
      %v548 = vmax.f32 %v482, 0.0
      %v549 = vmax.f32 %v485, 0.0
      %v550 = vmax.f32 %v490, 0.0
      %v551 = vmax.f32 %v493, 0.0
      %v552 = vmax.f32 %v498, 0.0
      %v553 = vmax.f32 %v501, 0.0
      %v554 = vmax.f32 %v506, 0.0
      %v555 = vmax.f32 %v509, 0.0
      %v556 = vmax.f32 %v514, 0.0
      %v557 = vmax.f32 %v517, 0.0
      %v558 = vmax.f32 %v522, 0.0
      %v559 = vmax.f32 %v525, 0.0
      %v560 = vpack.c.bf16 %v529, %v528
      %v561 = vpack.c.bf16 %v531, %v530
      %v562 = vpack.c.bf16 %v533, %v532
      %v563 = vpack.c.bf16 %v535, %v534
      %v564 = vpack.c.bf16 %v537, %v536
      %v565 = vpack.c.bf16 %v539, %v538
      %v566 = vpack.c.bf16 %v541, %v540
      %v567 = vpack.c.bf16 %v543, %v542
      %v568 = vpack.c.bf16 %v545, %v544
      %v569 = vpack.c.bf16 %v547, %v546
      %v570 = vpack.c.bf16 %v549, %v548
      %v571 = vpack.c.bf16 %v551, %v550
      %v572 = vpack.c.bf16 %v553, %v552
      %v573 = vpack.c.bf16 %v555, %v554
      %v574 = vpack.c.bf16 %v557, %v556
      %v575 = vpack.c.bf16 %v559, %v558
      %v592 = vunpack.c.l.b16 %v560
      %v593 = vunpack.c.h.b16 %v560
      %v594 = vunpack.c.l.b16 %v561
      %v595 = vunpack.c.h.b16 %v561
      %v596 = vunpack.c.l.b16 %v562
      %v597 = vunpack.c.h.b16 %v562
      %v598 = vunpack.c.l.b16 %v563
      %v599 = vunpack.c.h.b16 %v563
      %v600 = vunpack.c.l.b16 %v564
      %v601 = vunpack.c.h.b16 %v564
      %v602 = vunpack.c.l.b16 %v565
      %v603 = vunpack.c.h.b16 %v565
      %v604 = vunpack.c.l.b16 %v566
      %v605 = vunpack.c.h.b16 %v566
      %v606 = vunpack.c.l.b16 %v567
      %v607 = vunpack.c.h.b16 %v567
      %v608 = vunpack.c.l.b16 %v568
      %v609 = vunpack.c.h.b16 %v568
      %v610 = vunpack.c.l.b16 %v569
      %v611 = vunpack.c.h.b16 %v569
      %v612 = vunpack.c.l.b16 %v570
      %v613 = vunpack.c.h.b16 %v570
      %v614 = vunpack.c.l.b16 %v571
      %v615 = vunpack.c.h.b16 %v571
      %v616 = vunpack.c.l.b16 %v572
      %v617 = vunpack.c.h.b16 %v572
      %v618 = vunpack.c.l.b16 %v573
      %v619 = vunpack.c.h.b16 %v573
      %v620 = vunpack.c.l.b16 %v574
      %v621 = vunpack.c.h.b16 %v574
      %v622 = vunpack.c.l.b16 %v575
      %v623 = vunpack.c.h.b16 %v575
      %v624 = vpack.c.b16 %v592, %v592
      %v625 = vpack.c.b16 %v593, %v593
      %v626 = vpack.c.b16 %v594, %v594
      %v627 = vpack.c.b16 %v595, %v595
      %v628 = vpack.c.b16 %v596, %v596
      %v629 = vpack.c.b16 %v597, %v597
      %v630 = vpack.c.b16 %v598, %v598
      %v631 = vpack.c.b16 %v599, %v599
      %v632 = vpack.c.b16 %v600, %v600
      %v633 = vpack.c.b16 %v601, %v601
      %v634 = vpack.c.b16 %v602, %v602
      %v635 = vpack.c.b16 %v603, %v603
      %v636 = vpack.c.b16 %v604, %v604
      %v637 = vpack.c.b16 %v605, %v605
      %v638 = vpack.c.b16 %v606, %v606
      %v639 = vpack.c.b16 %v607, %v607
      %v640 = vpack.c.b16 %v608, %v608
      %v641 = vpack.c.b16 %v609, %v609
      %v642 = vpack.c.b16 %v610, %v610
      %v643 = vpack.c.b16 %v611, %v611
      %v644 = vpack.c.b16 %v612, %v612
      %v645 = vpack.c.b16 %v613, %v613
      %v646 = vpack.c.b16 %v614, %v614
      %v647 = vpack.c.b16 %v615, %v615
      %v648 = vpack.c.b16 %v616, %v616
      %v649 = vpack.c.b16 %v617, %v617
      %v650 = vpack.c.b16 %v618, %v618
      %v651 = vpack.c.b16 %v619, %v619
      %v652 = vpack.c.b16 %v620, %v620
      %v653 = vpack.c.b16 %v621, %v621
      %v654 = vpack.c.b16 %v622, %v622
      %v655 = vpack.c.b16 %v623, %v623
      %688 = vst [vmem:[%s172] sm:$0xf] %v624
      %689 = vst [vmem:[%s172 + $0x4] sm:$0xf] %v625
      %690 = vst [vmem:[%s172 + $0x8] sm:$0xf] %v626
      %691 = vst [vmem:[%s172 + $0xc] sm:$0xf] %v627
      %692 = vst [vmem:[%s172 + $0x10] sm:$0xf] %v628
      %693 = vst [vmem:[%s172 + $0x14] sm:$0xf] %v629
      %694 = vst [vmem:[%s172 + $0x18] sm:$0xf] %v630
      %695 = vst [vmem:[%s172 + $0x1c] sm:$0xf] %v631
      %696 = vst [vmem:[%s172 + $0x20] sm:$0xf] %v632
      %697 = vst [vmem:[%s172 + $0x24] sm:$0xf] %v633
      %698 = vst [vmem:[%s172 + $0x28] sm:$0xf] %v634
      %699 = vst [vmem:[%s172 + $0x2c] sm:$0xf] %v635
      %700 = vst [vmem:[%s172 + $0x30] sm:$0xf] %v636
      %701 = vst [vmem:[%s172 + $0x34] sm:$0xf] %v637
      %702 = vst [vmem:[%s172 + $0x38] sm:$0xf] %v638
      %703 = vst [vmem:[%s172 + $0x3c] sm:$0xf] %v639
      %704 = vst [vmem:[%s172 + $0x40] sm:$0xf] %v640
      %705 = vst [vmem:[%s172 + $0x44] sm:$0xf] %v641
      %706 = vst [vmem:[%s172 + $0x48] sm:$0xf] %v642
      %707 = vst [vmem:[%s172 + $0x4c] sm:$0xf] %v643
      %708 = vst [vmem:[%s172 + $0x50] sm:$0xf] %v644
      %709 = vst [vmem:[%s172 + $0x54] sm:$0xf] %v645
      %710 = vst [vmem:[%s172 + $0x58] sm:$0xf] %v646
      %711 = vst [vmem:[%s172 + $0x5c] sm:$0xf] %v647
      %712 = vst [vmem:[%s172 + $0x60] sm:$0xf] %v648
      %713 = vst [vmem:[%s172 + $0x64] sm:$0xf] %v649
      %714 = vst [vmem:[%s172 + $0x68] sm:$0xf] %v650
      %715 = vst [vmem:[%s172 + $0x6c] sm:$0xf] %v651
      %716 = vst [vmem:[%s172 + $0x70] sm:$0xf] %v652
      %717 = vst [vmem:[%s172 + $0x74] sm:$0xf] %v653
      %718 = vst [vmem:[%s172 + $0x78] sm:$0xf] %v654
      %719 = vst [vmem:[%s172 + $0x7c] sm:$0xf] %v655
      %s720 = smul.u32 32, %s14
      %p721 = scmp.lt.s32.totalorder %s720, 63
      %s722 = scalar_select %p721, %s720, 63
      %s723 = smul.addr %s722, 4
      %s724 = scalar_lea.vmem %s3, %s723
      // Predicated region
      $region33: #{basic_conv2d_nhwc.1} parent=31 // pred_check
        %p725 = pneg %p100
      $region34: #{basic_conv2d_nhwc.1} parent=31 // pred_check_branch
        %727 = sbr.rel (%p725) target = $region36
      $region35: #{basic_conv2d_nhwc.1} parent=31 // pred_region
        %s728 = smul.u32 32, %s14
      $region36: #{basic_conv2d_nhwc.1} parent=31 // pred_fallthru
        _
    $region32: #{basic_conv2d_nhwc.1} parent=5 // pred_fallthru
      _
    %p729 = scmp.le.s32.totalorder 2, %s9
    // Predicated region
    $region37: #{basic_conv2d_nhwc.1} parent=5 // pred_check
      %p730 = pneg %p729
    $region38: #{basic_conv2d_nhwc.1} parent=5 // pred_check_branch
      %732 = sbr.rel (%p730) target = $region40
    $region39: #{basic_conv2d_nhwc.1} parent=5 // pred_region
      %s733 = ssub.s32 %s9, 2
      // Predicated region
      $region41: #{basic_conv2d_nhwc.1} parent=39 // pred_check
        %p734 = pneg %p106
      $region42: #{basic_conv2d_nhwc.1} parent=39 // pred_check_branch
        %736 = sbr.rel (%p734) target = $region44
      $region43: #{basic_conv2d_nhwc.1} parent=39 // pred_region
        %s737 = smul.u32 32, %s15
        %p738 = scmp.lt.s32.totalorder %s737, 63
        %s739 = scalar_select %p738, %s737, 63
        %s740 = smul.addr %s739, 4
        %s741 = scalar_lea.vmem %s3, %s740
      $region44: #{basic_conv2d_nhwc.1} parent=39 // pred_fallthru
        _
    $region40: #{basic_conv2d_nhwc.1} parent=5 // pred_fallthru
      _
  $region6: #{basic_conv2d_nhwc.1} parent=0 // loop_footer
    %s13 = sadd.s32 1, %s9
  $region7: #{basic_conv2d_nhwc.1} parent=0 // loop_footer_branch
    %8 = sbr.rel target = $region3
  $region8: #{basic_conv2d_nhwc.1} parent=0 // loop_exit
    _

</llo_original>
